<compile_context>
chip_gen: v5e
topology: v5e:2x2
jax: 0.10.0
libtpu: 0.0.40
codegen_flags: <defaults>
</compile_context>

<pallas_src>
import jax
import jax.numpy as jnp
from jax.experimental import pallas as pl
from jax.experimental.pallas import tpu as pltpu

LANE = 128


def _round_up(n, m):
    return ((n + m - 1) // m) * m


def mlp_kernel(x_ref, wa_ref, ba_ref, wb_ref, bb_ref, y_ref, x3_ref):
    # Exactly two dots + two bias adds; everything else (folding, padding,
    # broadcasting setup) happens once in the wrapper.
    x = x_ref[...]
    # x3 = x @ Wa + ba   (f32 accumulation on the MXU)
    x3 = jnp.dot(x, wa_ref[...], preferred_element_type=jnp.float32) + ba_ref[...]
    # y  = x3 @ Wb + bb
    y = jnp.dot(x3.astype(wb_ref.dtype), wb_ref[...],
                preferred_element_type=jnp.float32) + bb_ref[...]
    x3_ref[...] = x3.astype(x3_ref.dtype)
    y_ref[...] = y.astype(y_ref.dtype)


def linear_model_forward(x, params, *, batch_tile=512, compute_dtype=jnp.float32):
    """params: list of (W [in,out], b [1,out]) for linear1..linear5.

    Returns (y [B,5], x3 [B,32]) matching LinearModel.forward.
    """
    (w1, b1), (w2, b2), (w3, b3), (w4, b4), (w5, b5) = params

    # ---- Algebraic folding of the 5 linears into 2 (done once, outside the kernel).
    wa = w1 @ w2 @ w3                      # [16, 32]
    ba = (b1 @ w2 + b2) @ w3 + b3          # [1, 32]
    wb = w4 @ w5                           # [32, 5]
    bb = b4 @ w5 + b5                      # [1, 5]

    d_in, d_mid = wa.shape                 # 16, 32
    d_out = wb.shape[1]                    # 5

    # ---- Zero-pad to 128 lanes so both outputs are lane-dense (unmasked stores).
    wa_p = jnp.zeros((d_in, LANE), compute_dtype).at[:, :d_mid].set(wa.astype(compute_dtype))
    ba_p = jnp.zeros((1, LANE), jnp.float32).at[:, :d_mid].set(ba)
    wb_p = jnp.zeros((LANE, LANE), compute_dtype).at[:d_mid, :d_out].set(wb.astype(compute_dtype))
    bb_p = jnp.zeros((1, LANE), jnp.float32).at[:, :d_out].set(bb)

    # ---- Batch grid: big tiles, pinned weights, pipelined x / y / x3 streams.
    B = x.shape[0]
    tb = min(batch_tile, _round_up(B, 8))
    b_pad = _round_up(B, tb)
    x_c = x.astype(compute_dtype)
    if b_pad != B:
        x_c = jnp.pad(x_c, ((0, b_pad - B), (0, 0)))
    grid = (b_pad // tb,)

    y_p, x3_p = pl.pallas_call(
        mlp_kernel,
        out_shape=(
            jax.ShapeDtypeStruct((b_pad, LANE), jnp.float32),   # y  (padded lanes)
            jax.ShapeDtypeStruct((b_pad, LANE), jnp.float32),   # x3 (padded lanes)
        ),
        grid=grid,
        in_specs=[
            pl.BlockSpec((tb, d_in), lambda i: (i, 0)),         # x: streamed per tile
            pl.BlockSpec((d_in, LANE), lambda i: (0, 0)),       # Wa: VMEM-resident
            pl.BlockSpec((1, LANE), lambda i: (0, 0)),          # ba
            pl.BlockSpec((LANE, LANE), lambda i: (0, 0)),       # Wb
            pl.BlockSpec((1, LANE), lambda i: (0, 0)),          # bb
        ],
        out_specs=(
            pl.BlockSpec((tb, LANE), lambda i: (i, 0)),
            pl.BlockSpec((tb, LANE), lambda i: (i, 0)),
        ),
        compiler_params=pltpu.CompilerParams(
            dimension_semantics=("parallel",),
        ),
    )(x_c, wa_p, ba_p, wb_p, bb_p)

    # Strip batch/lane padding in the wrapper.
    return y_p[:B, :d_out], x3_p[:B, :d_mid]


def init_params(key):
    """Deterministic init matching nn.Linear shapes (stored transposed: [in,out])."""
    dims = [(16, 64), (64, 32), (32, 32), (32, 32), (32, 5)]
    params = []
    for i, (din, dout) in enumerate(dims):
        kw, kb = jax.random.split(jax.random.fold_in(key, i))
        bound = 1.0 / jnp.sqrt(din)
        w = jax.random.uniform(kw, (din, dout), jnp.float32, -bound, bound)
        b = jax.random.uniform(kb, (1, dout), jnp.float32, -bound, bound)
        params.append((w, b))
    return params


def reference_forward(x, params):
    h = x
    acts = []
    for w, b in params:
        h = h @ w + b
        acts.append(h)
    return acts[4], acts[2]  # (x, x3)


if __name__ == "__main__":
    key = jax.random.PRNGKey(0)
    kx, kp = jax.random.split(key)

    B = 8
    x = jax.random.normal(kx, (B, 16), jnp.float32)
    params = init_params(kp)

    y, x3 = linear_model_forward(x, params)
    y = jax.block_until_ready(y)
    x3 = jax.block_until_ready(x3)

    y_ref, x3_ref = reference_forward(x, params)
    assert y.shape == (B, 5) and x3.shape == (B, 32)
    # Folding reassociates the FP sums slightly; 1e-4 is far tighter than any
    # real bug would allow.
    assert jnp.allclose(y, y_ref, atol=1e-4, rtol=1e-4)
    assert jnp.allclose(x3, x3_ref, atol=1e-4, rtol=1e-4)

    print("KERNEL_OK")
</pallas_src>

<mosaic_0001>
module attributes {stable_mosaic.version = 11 : i64} {
  func.func @mlp_kernel(%arg0: i32, %arg1: memref<8x16xf32, #tpu.memory_space<vmem>>, %arg2: memref<16x128xf32, #tpu.memory_space<vmem>>, %arg3: memref<1x128xf32, #tpu.memory_space<vmem>>, %arg4: memref<128x128xf32, #tpu.memory_space<vmem>>, %arg5: memref<1x128xf32, #tpu.memory_space<vmem>>, %arg6: memref<8x128xf32, #tpu.memory_space<vmem>>, %arg7: memref<8x128xf32, #tpu.memory_space<vmem>>) attributes {dimension_semantics = [#tpu.dimension_semantics<parallel>], iteration_bounds = array<i64: 1>, scalar_prefetch = 0 : i64, scratch_operands = 0 : i64, tpu.core_type = #tpu.core_type<tc>, window_params = [{transform_indices = @transform_0, window_bounds = array<i64: 8, 16>}, {pipeline_mode = #tpu.pipeline_mode<synchronous>, transform_indices = @transform_1, window_bounds = array<i64: 16, 128>}, {pipeline_mode = #tpu.pipeline_mode<synchronous>, transform_indices = @transform_2, window_bounds = array<i64: 1, 128>}, {pipeline_mode = #tpu.pipeline_mode<synchronous>, transform_indices = @transform_3, window_bounds = array<i64: 128, 128>}, {pipeline_mode = #tpu.pipeline_mode<synchronous>, transform_indices = @transform_4, window_bounds = array<i64: 1, 128>}, {transform_indices = @transform_5, window_bounds = array<i64: 8, 128>}, {transform_indices = @transform_6, window_bounds = array<i64: 8, 128>}]} {
    %c0 = arith.constant 0 : index
    %c0_0 = arith.constant 0 : index
    %0 = vector.load %arg1[%c0, %c0_0] : memref<8x16xf32, #tpu.memory_space<vmem>>, vector<8x16xf32>
    %c0_1 = arith.constant 0 : index
    %c0_2 = arith.constant 0 : index
    %1 = vector.load %arg2[%c0_1, %c0_2] : memref<16x128xf32, #tpu.memory_space<vmem>>, vector<16x128xf32>
    %cst = arith.constant dense<0.000000e+00> : vector<8x128xf32>
    %2 = tpu.matmul %0, %1, %cst {dimension_numbers = #tpu.dot_dimension_numbers<[1], [0], [0], [1], [0, 0, 1, 1], [], []>} : vector<8x16xf32>, vector<16x128xf32>, vector<8x128xf32> -> vector<8x128xf32>
    %c0_3 = arith.constant 0 : index
    %c0_4 = arith.constant 0 : index
    %3 = vector.load %arg3[%c0_3, %c0_4] : memref<1x128xf32, #tpu.memory_space<vmem>>, vector<1x128xf32>
    %4 = vector.broadcast %3 : vector<1x128xf32> to vector<8x128xf32>
    %5 = arith.addf %2, %4 : vector<8x128xf32>
    %c0_5 = arith.constant 0 : index
    %c0_6 = arith.constant 0 : index
    %6 = vector.load %arg4[%c0_5, %c0_6] : memref<128x128xf32, #tpu.memory_space<vmem>>, vector<128x128xf32>
    %cst_7 = arith.constant dense<0.000000e+00> : vector<8x128xf32>
    %7 = tpu.matmul %5, %6, %cst_7 {dimension_numbers = #tpu.dot_dimension_numbers<[1], [0], [0], [1], [0, 0, 1, 1], [], []>} : vector<8x128xf32>, vector<128x128xf32>, vector<8x128xf32> -> vector<8x128xf32>
    %c0_8 = arith.constant 0 : index
    %c0_9 = arith.constant 0 : index
    %8 = vector.load %arg5[%c0_8, %c0_9] : memref<1x128xf32, #tpu.memory_space<vmem>>, vector<1x128xf32>
    %9 = vector.broadcast %8 : vector<1x128xf32> to vector<8x128xf32>
    %10 = arith.addf %7, %9 : vector<8x128xf32>
    %c0_10 = arith.constant 0 : index
    %c0_11 = arith.constant 0 : index
    %11 = vector.load %arg7[%c0_10, %c0_11] : memref<8x128xf32, #tpu.memory_space<vmem>>, vector<8x128xf32>
    tpu.vector_store %arg7[%c0_10, %c0_11], %5 {strides = array<i32>} : memref<8x128xf32, #tpu.memory_space<vmem>>, vector<8x128xf32>,
    %c0_12 = arith.constant 0 : index
    %c0_13 = arith.constant 0 : index
    %12 = vector.load %arg6[%c0_12, %c0_13] : memref<8x128xf32, #tpu.memory_space<vmem>>, vector<8x128xf32>
    tpu.vector_store %arg6[%c0_12, %c0_13], %10 {strides = array<i32>} : memref<8x128xf32, #tpu.memory_space<vmem>>, vector<8x128xf32>,
    return
  }
  func.func @transform_0(%arg0: i32) -> (i32, i32) {
    %c0_i32 = arith.constant 0 : i32
    %c0_i32_0 = arith.constant 0 : i32
    return %arg0, %c0_i32 : i32, i32
  }
  func.func @transform_1(%arg0: i32) -> (i32, i32) {
    %c0_i32 = arith.constant 0 : i32
    %c0_i32_0 = arith.constant 0 : i32
    %c0_i32_1 = arith.constant 0 : i32
    return %c0_i32, %c0_i32_0 : i32, i32
  }
  func.func @transform_2(%arg0: i32) -> (i32, i32) {
    %c0_i32 = arith.constant 0 : i32
    %c0_i32_0 = arith.constant 0 : i32
    %c0_i32_1 = arith.constant 0 : i32
    return %c0_i32, %c0_i32_0 : i32, i32
  }
  func.func @transform_3(%arg0: i32) -> (i32, i32) {
    %c0_i32 = arith.constant 0 : i32
    %c0_i32_0 = arith.constant 0 : i32
    %c0_i32_1 = arith.constant 0 : i32
    return %c0_i32, %c0_i32_0 : i32, i32
  }
  func.func @transform_4(%arg0: i32) -> (i32, i32) {
    %c0_i32 = arith.constant 0 : i32
    %c0_i32_0 = arith.constant 0 : i32
    %c0_i32_1 = arith.constant 0 : i32
    return %c0_i32, %c0_i32_0 : i32, i32
  }
  func.func @transform_5(%arg0: i32) -> (i32, i32) {
    %c0_i32 = arith.constant 0 : i32
    %c0_i32_0 = arith.constant 0 : i32
    return %arg0, %c0_i32 : i32, i32
  }
  func.func @transform_6(%arg0: i32) -> (i32, i32) {
    %c0_i32 = arith.constant 0 : i32
    %c0_i32_0 = arith.constant 0 : i32
    return %arg0, %c0_i32 : i32, i32
  }
}

</mosaic_0001>

<llo_original>
// kernel: tpu_custom_call.1
$region0: #{tpu_custom_call.1}
  #allocation0 [shape = 'u32[]', space=smem, size = 0x4, offset = 0x4, fixed_abs, tag = 'smem constant byte address 0x4 - core index']
  #allocation1 [shape = 'u32[72,128]{1,0:T(1,128)}', space=vmem, size = 0x9000, scoped, tag = 'internal scratch']
  %s0 = inlined_call_operand.hbm [shape: f32[8,16], index: 0, kind: input, shape index: {}]
  %s1 = inlined_call_operand.hbm [shape: f32[16,128], index: 1, kind: input, shape index: {}]
  %s2 = inlined_call_operand.vmem [shape: f32[1,128], index: 2, kind: input, shape index: {}]
  %s3 = inlined_call_operand.hbm [shape: f32[128,128], index: 3, kind: input, shape index: {}]
  %s4 = inlined_call_operand.vmem [shape: f32[1,128], index: 4, kind: input, shape index: {}]
  %s5 = inlined_call_operand.hbm [shape: f32[8,128], index: 5, kind: output, shape index: {0}]
  %s6 = inlined_call_operand.hbm [shape: f32[8,128], index: 6, kind: output, shape index: {1}]
  %7 = xla_tuple %s5, %s6
  %s8 = sld [smem:[#allocation0]]
  $region50: #{tpu_custom_call.1} parent=0
    _
  %s10 = ssub.s32 1, %s8
  %s11 = scalar_select 0, %s10, %s8
  $region1: #{tpu_custom_call.1} parent=0
    #allocation2 [shape = 'u8[4096]{0}', space=vmem, size = 0x1000, scoped, tag = 'input window, operand 0, single buffered']
    #allocation3 [shape = 's32[1]{0}', space=sflag, size = 0x4, scoped, tag = 'scoped memory for tpu_custom_call.1']
    #allocation4 [shape = 's32[1]{0}', space=sflag, size = 0x4, scoped, tag = 'scoped memory for tpu_custom_call.1']
    #allocation5 [shape = 'u8[8192]{0}', space=vmem, size = 0x2000, scoped, tag = 'input window, operand 1, single buffered']
    #allocation6 [shape = 's32[1]{0}', space=sflag, size = 0x4, scoped, tag = 'scoped memory for tpu_custom_call.1']
    #allocation7 [shape = 'u8[65536]{0}', space=vmem, size = 0x10000, scoped, tag = 'input window, operand 3, single buffered']
    #allocation8 [shape = 'u8[4096]{0}', space=vmem, size = 0x1000, scoped, tag = 'output window, operand 0, single buffered']
    #allocation9 [shape = 'u8[4096]{0}', space=vmem, size = 0x1000, scoped, tag = 'output window, operand 1, single buffered']
    #allocation10 [shape = 's32[1]{0}', space=sflag, size = 0x4, scoped, tag = 'scoped memory for tpu_custom_call.1']
    %12 = vsyncpa [#allocation3], 0
    %13 = vsyncpa [#allocation6], 0
    %14 = vsyncpa [#allocation4], 0
    %15 = vsyncpa [#allocation10], 0
    // Predicated region
    $region2: #{tpu_custom_call.1} parent=1 // pred_check
      _
    $region3: #{tpu_custom_call.1} parent=1 // pred_check_branch
      %17 = sbr.rel (0) target = $region5
    $region4: #{tpu_custom_call.1} parent=1 // pred_region
      %19 = vsyncadd [#allocation3], 0
      %s21 = sshll.u32 %s0, 4
      %s22 = int_to_ptr.hbm [resolvable:$true] %s21
      %s23 = sshll.u32 [#allocation2], 4
      %s24 = int_to_ptr.vmem [resolvable:$true] %s23
      %26 = dma.hbm_to_vmem [thread:$0]  %s22, 128, %s24, [#allocation3]
    $region5: #{tpu_custom_call.1} parent=1 // pred_fallthru
      _
    // Predicated region
    $region6: #{tpu_custom_call.1} parent=1 // pred_check
      _
    $region7: #{tpu_custom_call.1} parent=1 // pred_check_branch
      %28 = sbr.rel (0) target = $region9
    $region8: #{tpu_custom_call.1} parent=1 // pred_region
      %30 = vsyncadd [#allocation6], 0
      %s31 = sshll.u32 %s1, 4
      %s32 = int_to_ptr.hbm [resolvable:$true] %s31
      %s33 = sshll.u32 [#allocation5], 4
      %s34 = int_to_ptr.vmem [resolvable:$true] %s33
      %39 = dma.hbm_to_vmem [thread:$0]  %s32, 256, %s34, [#allocation6], 128, 128, 8
    $region9: #{tpu_custom_call.1} parent=1 // pred_fallthru
      _
    // Predicated region
    $region10: #{tpu_custom_call.1} parent=1 // pred_check
      _
    $region11: #{tpu_custom_call.1} parent=1 // pred_check_branch
      %41 = sbr.rel (0) target = $region13
    $region12: #{tpu_custom_call.1} parent=1 // pred_region
      _
    $region13: #{tpu_custom_call.1} parent=1 // pred_fallthru
      _
    // Predicated region
    $region14: #{tpu_custom_call.1} parent=1 // pred_check
      _
    $region15: #{tpu_custom_call.1} parent=1 // pred_check_branch
      %43 = sbr.rel (0) target = $region17
    $region16: #{tpu_custom_call.1} parent=1 // pred_region
      %45 = vsyncadd [#allocation6], 0
      %s46 = sshll.u32 %s3, 4
      %s47 = int_to_ptr.hbm [resolvable:$true] %s46
      %s48 = sshll.u32 [#allocation7], 4
      %s49 = int_to_ptr.vmem [resolvable:$true] %s48
      %54 = dma.hbm_to_vmem [thread:$0]  %s47, 2048, %s49, [#allocation6], 128, 128, 8
    $region17: #{tpu_custom_call.1} parent=1 // pred_fallthru
      _
    // Predicated region
    $region18: #{tpu_custom_call.1} parent=1 // pred_check
      _
    $region19: #{tpu_custom_call.1} parent=1 // pred_check_branch
      %56 = sbr.rel (0) target = $region21
    $region20: #{tpu_custom_call.1} parent=1 // pred_region
      _
    $region21: #{tpu_custom_call.1} parent=1 // pred_fallthru
      _
    // Predicated region
    $region22: #{tpu_custom_call.1} parent=1 // pred_check
      _
    $region23: #{tpu_custom_call.1} parent=1 // pred_check_branch
      %58 = sbr.rel (0) target = $region25
    $region24: #{tpu_custom_call.1} parent=1 // pred_region
      %60 = dma.done [#allocation3], 128
    $region25: #{tpu_custom_call.1} parent=1 // pred_fallthru
      _
    // Predicated region
    $region26: #{tpu_custom_call.1} parent=1 // pred_check
      _
    $region27: #{tpu_custom_call.1} parent=1 // pred_check_branch
      %62 = sbr.rel (0) target = $region29
    $region28: #{tpu_custom_call.1} parent=1 // pred_region
      %64 = dma.done [#allocation6], 256
    $region29: #{tpu_custom_call.1} parent=1 // pred_fallthru
      _
    // Predicated region
    $region30: #{tpu_custom_call.1} parent=1 // pred_check
      _
    $region31: #{tpu_custom_call.1} parent=1 // pred_check_branch
      %66 = sbr.rel (0) target = $region33
    $region32: #{tpu_custom_call.1} parent=1 // pred_region
      %68 = dma.done [#allocation6], 2048
    $region33: #{tpu_custom_call.1} parent=1 // pred_fallthru
      _
    %v69 = vld [vmem:[#allocation2] sm:$0xff]
    %v70 = vld [vmem:[#allocation5] sm:$0xff]
    %v71 = vld [vmem:[#allocation5 + $0x8] sm:$0xff]
    %v72 = vld [vmem:[%s2] sm:$0x1]
    %v74 = vperm.slane %v72, 0
    %vm76 = vcmask 130048
    %v78 = vsel %vm76, %v69, 0
    %80 = vmatpush.msra.mxu0 0.0
    %81 = vmatpush.msra.mxu0 0.0
    %82 = vmatpush.msra.mxu0 0.0
    %83 = vmatpush.msra.mxu0 0.0
    %84 = vmatpush.msra.mxu0 0.0
    %85 = vmatpush.msra.mxu0 0.0
    %86 = vmatpush.msra.mxu0 0.0
    %87 = vmatpush.msra.mxu0 0.0
    %88 = vmatpush.msra.mxu0 0.0
    %89 = vmatpush.msra.mxu0 0.0
    %90 = vmatpush.msra.mxu0 0.0
    %91 = vmatpush.msra.mxu0 0.0
    %92 = vmatpush.msra.mxu0 0.0
    %93 = vmatpush.msra.mxu0 0.0
    %94 = vmatpush.msra.mxu0 %v71
    %95 = vmatpush.msra.mxu0 %v70
    %96 = vmatmul.f32.gmra.mxu0 %v78
    %v97 = vpop.f32.mrf.mxu0
    %v98 = vadd.f32 %v74, %v97
    %99 = vdwg.mxu0
    %v100 = vld [vmem:[#allocation7] sm:$0xff]
    %v101 = vld [vmem:[#allocation7 + $0x8] sm:$0xff]
    %v102 = vld [vmem:[#allocation7 + $0x10] sm:$0xff]
    %v103 = vld [vmem:[#allocation7 + $0x18] sm:$0xff]
    %v104 = vld [vmem:[#allocation7 + $0x20] sm:$0xff]
    %v105 = vld [vmem:[#allocation7 + $0x28] sm:$0xff]
    %v106 = vld [vmem:[#allocation7 + $0x30] sm:$0xff]
    %v107 = vld [vmem:[#allocation7 + $0x38] sm:$0xff]
    %v108 = vld [vmem:[#allocation7 + $0x40] sm:$0xff]
    %v109 = vld [vmem:[#allocation7 + $0x48] sm:$0xff]
    %v110 = vld [vmem:[#allocation7 + $0x50] sm:$0xff]
    %v111 = vld [vmem:[#allocation7 + $0x58] sm:$0xff]
    %v112 = vld [vmem:[#allocation7 + $0x60] sm:$0xff]
    %v113 = vld [vmem:[#allocation7 + $0x68] sm:$0xff]
    %v114 = vld [vmem:[#allocation7 + $0x70] sm:$0xff]
    %v115 = vld [vmem:[#allocation7 + $0x78] sm:$0xff]
    %v116 = vld [vmem:[%s4] sm:$0x1]
    %v118 = vperm.slane %v116, 0
    %120 = vmatpush.msra.mxu0 %v115
    %121 = vmatpush.msra.mxu0 %v114
    %122 = vmatpush.msra.mxu0 %v113
    %123 = vmatpush.msra.mxu0 %v112
    %124 = vmatpush.msra.mxu0 %v111
    %125 = vmatpush.msra.mxu0 %v110
    %126 = vmatpush.msra.mxu0 %v109
    %127 = vmatpush.msra.mxu0 %v108
    %128 = vmatpush.msra.mxu0 %v107
    %129 = vmatpush.msra.mxu0 %v106
    %130 = vmatpush.msra.mxu0 %v105
    %131 = vmatpush.msra.mxu0 %v104
    %132 = vmatpush.msra.mxu0 %v103
    %133 = vmatpush.msra.mxu0 %v102
    %134 = vmatpush.msra.mxu0 %v101
    %135 = vmatpush.msra.mxu0 %v100
    %136 = vmatmul.f32.gmra.mxu0 %v98
    %v137 = vpop.f32.mrf.mxu0
    %v138 = vadd.f32 %v118, %v137
    %139 = vdwg.mxu0
    %140 = vst [vmem:[#allocation9] sm:$0xff] %v98
    %141 = vst [vmem:[#allocation8] sm:$0xff] %v138
    // Predicated region
    $region34: #{tpu_custom_call.1} parent=1 // pred_check
      _
    $region35: #{tpu_custom_call.1} parent=1 // pred_check_branch
      %143 = sbr.rel (0) target = $region37
    $region36: #{tpu_custom_call.1} parent=1 // pred_region
      %145 = vsyncadd [#allocation4], 0
      %s147 = sshll.u32 [#allocation8], 4
      %s148 = int_to_ptr.vmem [resolvable:$true] %s147
      %s149 = sshll.u32 %s5, 4
      %s150 = int_to_ptr.hbm [resolvable:$true] %s149
      %152 = dma.vmem_to_hbm [thread:$0]  %s148, 128, %s150, [#allocation4]
    $region37: #{tpu_custom_call.1} parent=1 // pred_fallthru
      _
    // Predicated region
    $region38: #{tpu_custom_call.1} parent=1 // pred_check
      _
    $region39: #{tpu_custom_call.1} parent=1 // pred_check_branch
      %154 = sbr.rel (0) target = $region41
    $region40: #{tpu_custom_call.1} parent=1 // pred_region
      %156 = vsyncadd [#allocation10], 0
      %s158 = sshll.u32 [#allocation9], 4
      %s159 = int_to_ptr.vmem [resolvable:$true] %s158
      %s160 = sshll.u32 %s6, 4
      %s161 = int_to_ptr.hbm [resolvable:$true] %s160
      %163 = dma.vmem_to_hbm [thread:$0]  %s159, 128, %s161, [#allocation10]
    $region41: #{tpu_custom_call.1} parent=1 // pred_fallthru
      _
    // Predicated region
    $region42: #{tpu_custom_call.1} parent=1 // pred_check
      _
    $region43: #{tpu_custom_call.1} parent=1 // pred_check_branch
      %165 = sbr.rel (0) target = $region45
    $region44: #{tpu_custom_call.1} parent=1 // pred_region
      %167 = dma.done [#allocation4], 128
    $region45: #{tpu_custom_call.1} parent=1 // pred_fallthru
      _
    // Predicated region
    $region46: #{tpu_custom_call.1} parent=1 // pred_check
      _
    $region47: #{tpu_custom_call.1} parent=1 // pred_check_branch
      %169 = sbr.rel (0) target = $region49
    $region48: #{tpu_custom_call.1} parent=1 // pred_region
      %171 = dma.done [#allocation10], 128
    $region49: #{tpu_custom_call.1} parent=1 // pred_fallthru
      _
    %172 = vsyncpa [#allocation3], 1
    %173 = vsyncpa [#allocation6], 1
    %174 = vsyncpa [#allocation4], 1
    %175 = vsyncpa [#allocation10], 1

</llo_original>
